<compile_context>
chip_gen: v6e
topology: v6e:2x2x1
jax: 0.10.0
libtpu: 0.0.40
codegen_flags: <defaults>
</compile_context>

<pallas_src>
import jax
import jax.numpy as jnp
from jax.experimental import pallas as pl
from jax.experimental.pallas import tpu as pltpu


_LANE_WIDTH = 1024             # last dim of the 2D slab: 8 * 128 (lane-dense)
_TARGET_BLOCK_BYTES = 2 << 20  # ~2 MiB per block


def _make_sine_kernel(w0):
    w0 = float(w0)

    def kernel(x_ref, o_ref):
        x = x_ref[...].astype(jnp.float32)
        o_ref[...] = jnp.sin(w0 * x).astype(o_ref.dtype)

    return kernel


def sine(x, w0=1.0):
    """Elementwise sin(w0 * x) with a Pallas TPU kernel.

    Floating inputs keep their dtype (compute happens in f32 inside the
    kernel); non-floating inputs are promoted to float32 like torch.sin.
    """
    orig_shape = x.shape
    if jnp.issubdtype(x.dtype, jnp.floating):
        work_dtype = x.dtype
    else:
        work_dtype = jnp.float32  # torch.sin promotes integer inputs to float
    xf = x.reshape(-1)
    if xf.dtype != work_dtype:
        xf = xf.astype(work_dtype)
    n = xf.shape[0]
    itemsize = jnp.dtype(work_dtype).itemsize

    # Minimal tile granularity: (packed-sublane rows, _LANE_WIDTH lanes).
    sub = 8 * max(1, 4 // itemsize)       # f32: 8, bf16/f16: 16, int8/fp8: 32
    min_chunk = sub * _LANE_WIDTH         # elements per minimal chunk

    # ~2 MiB blocks, shrunk for small arrays, rebalanced to minimise padding.
    n_chunks = -(-n // min_chunk)
    chunks_per_block = max(1, _TARGET_BLOCK_BYTES // (min_chunk * itemsize))
    chunks_per_block = min(chunks_per_block, n_chunks)
    n_blocks = -(-n_chunks // chunks_per_block)
    chunks_per_block = -(-n_chunks // n_blocks)   # rebalance: less tail padding
    total_chunks = n_blocks * chunks_per_block

    n_pad = total_chunks * min_chunk
    if n_pad != n:
        xf = jnp.pad(xf, (0, n_pad - n))  # sin(0) = 0: zero padding is benign
    rows = total_chunks * sub
    block_rows = chunks_per_block * sub
    x2d = xf.reshape(rows, _LANE_WIDTH)

    out2d = pl.pallas_call(
        _make_sine_kernel(w0),
        out_shape=jax.ShapeDtypeStruct((rows, _LANE_WIDTH), work_dtype),
        grid=(n_blocks,),
        in_specs=[pl.BlockSpec((block_rows, _LANE_WIDTH), lambda i: (i, 0))],
        out_specs=pl.BlockSpec((block_rows, _LANE_WIDTH), lambda i: (i, 0)),
        compiler_params=pltpu.CompilerParams(
            dimension_semantics=("parallel",),
            vmem_limit_bytes=32 * 1024 * 1024,
        ),
    )(x2d)

    if n_pad == n:
        return out2d.reshape(orig_shape)
    return out2d.reshape(-1)[:n].reshape(orig_shape)


if __name__ == "__main__":
    key = jax.random.PRNGKey(0)
    # Small NCHW input consistent with how Sine is used inside SIREN convs.
    x = jax.random.normal(key, (2, 4, 16, 16), dtype=jnp.float32)
    w0 = 30.0  # typical SIREN first-layer frequency; module default is 1.0

    y = jax.block_until_ready(sine(x, w0=w0))
    y_ref = jnp.sin(w0 * x)
    assert y.shape == x.shape and y.dtype == x.dtype
    assert jnp.allclose(y, y_ref, atol=1e-5, rtol=1e-5)

    # Aligned path (no pad, no tail slice), default w0=1.0.
    x2 = jax.random.normal(jax.random.PRNGKey(1), (8, 1024), dtype=jnp.float32)
    y2 = jax.block_until_ready(sine(x2))
    assert jnp.allclose(y2, jnp.sin(x2), atol=1e-5, rtol=1e-5)

    # bf16 path: native dtype through the kernel, f32 compute inside.
    xb = jax.random.normal(jax.random.PRNGKey(2), (2, 4, 16, 16),
                           dtype=jnp.bfloat16)
    yb = jax.block_until_ready(sine(xb, w0=w0))
    yb_ref = jnp.sin(jnp.float32(w0) * xb.astype(jnp.float32)).astype(
        jnp.bfloat16)
    assert yb.dtype == jnp.bfloat16
    assert jnp.allclose(yb.astype(jnp.float32), yb_ref.astype(jnp.float32),
                        atol=2e-2, rtol=2e-2)

    print("KERNEL_OK")
</pallas_src>

<mosaic_0001>
module attributes {stable_mosaic.version = 11 : i64} {
  func.func @kernel(%arg0: i32, %arg1: memref<8x1024xf32, #tpu.memory_space<vmem>>, %arg2: memref<8x1024xf32, #tpu.memory_space<vmem>>) attributes {dimension_semantics = [#tpu.dimension_semantics<parallel>], iteration_bounds = array<i64: 1>, scalar_prefetch = 0 : i64, scratch_operands = 0 : i64, tpu.core_type = #tpu.core_type<tc>, window_params = [{transform_indices = @transform_0, window_bounds = array<i64: 8, 1024>}, {transform_indices = @transform_1, window_bounds = array<i64: 8, 1024>}]} {
    %c0 = arith.constant 0 : index
    %c0_0 = arith.constant 0 : index
    %0 = vector.load %arg1[%c0, %c0_0] : memref<8x1024xf32, #tpu.memory_space<vmem>>, vector<8x1024xf32>
    %cst = arith.constant 3.000000e+01 : f32
    %1 = vector.broadcast %cst : f32 to vector<8x1024xf32>
    %2 = arith.mulf %1, %0 : vector<8x1024xf32>
    %3 = math.sin %2 : vector<8x1024xf32>
    %c0_1 = arith.constant 0 : index
    %c0_2 = arith.constant 0 : index
    %4 = vector.load %arg2[%c0_1, %c0_2] : memref<8x1024xf32, #tpu.memory_space<vmem>>, vector<8x1024xf32>
    tpu.vector_store %arg2[%c0_1, %c0_2], %3 {strides = array<i32>} : memref<8x1024xf32, #tpu.memory_space<vmem>>, vector<8x1024xf32>,
    return
  }
  func.func @transform_0(%arg0: i32) -> (i32, i32) {
    %c0_i32 = arith.constant 0 : i32
    %c0_i32_0 = arith.constant 0 : i32
    return %arg0, %c0_i32 : i32, i32
  }
  func.func @transform_1(%arg0: i32) -> (i32, i32) {
    %c0_i32 = arith.constant 0 : i32
    %c0_i32_0 = arith.constant 0 : i32
    return %arg0, %c0_i32 : i32, i32
  }
}

</mosaic_0001>

<llo_original>
// kernel: tpu_custom_call.1
$region0: #{tpu_custom_call.1}
  #allocation0 [shape = 'u32[]', space=smem, size = 0x4, offset = 0x4, fixed_abs, tag = 'smem constant byte address 0x4 - core index']
  #allocation1 [shape = 'u32[144,128]{1,0:T(1,128)}', space=vmem, size = 0x12000, scoped, tag = 'internal scratch']
  %s0 = inlined_call_operand.hbm [shape: f32[8,1024], index: 0, kind: input, shape index: {}]
  %s1 = inlined_call_operand.hbm [shape: f32[8,1024], index: 1, kind: output, shape index: {}]
  %s2 = sld [smem:[#allocation0]]
  $region18: #{tpu_custom_call.1} parent=0
    _
  %s4 = ssub.s32 1, %s2
  %s5 = scalar_select 0, %s4, %s2
  $region1: #{tpu_custom_call.1} parent=0
    #allocation2 [shape = 'u8[32768]{0}', space=vmem, size = 0x8000, scoped, tag = 'input window, operand 0, single buffered']
    #allocation3 [shape = 's32[1]{0}', space=sflag, size = 0x4, scoped, tag = 'scoped memory for tpu_custom_call.1']
    #allocation4 [shape = 's32[1]{0}', space=sflag, size = 0x4, scoped, tag = 'scoped memory for tpu_custom_call.1']
    #allocation5 [shape = 'u8[32768]{0}', space=vmem, size = 0x8000, scoped, tag = 'output window, operand 0, single buffered']
    %6 = vsyncpa [#allocation3], 0
    %7 = vsyncpa [#allocation4], 0
    // Predicated region
    $region2: #{tpu_custom_call.1} parent=1 // pred_check
      _
    $region3: #{tpu_custom_call.1} parent=1 // pred_check_branch
      %9 = sbr.rel (0) target = $region5
    $region4: #{tpu_custom_call.1} parent=1 // pred_region
      %s11 = ssub.s32 1024, 1024
      %12 = vsyncadd [#allocation3], %s11
      %s14 = sshll.u32 [#allocation2], 4
      %s15 = int_to_ptr.vmem [resolvable:$true] %s14
      %17 = dma.hbm_to_vmem [thread:$0]  %s0, 1024, %s15, [#allocation3]
    $region5: #{tpu_custom_call.1} parent=1 // pred_fallthru
      _
    // Predicated region
    $region6: #{tpu_custom_call.1} parent=1 // pred_check
      _
    $region7: #{tpu_custom_call.1} parent=1 // pred_check_branch
      %19 = sbr.rel (0) target = $region9
    $region8: #{tpu_custom_call.1} parent=1 // pred_region
      %20 = dma.done [#allocation3], 1024
    $region9: #{tpu_custom_call.1} parent=1 // pred_fallthru
      _
    %v21 = vld [vmem:[#allocation2] sm:$0xff]
    %v22 = vld [vmem:[#allocation2 + $0x8] sm:$0xff]
    %v23 = vld [vmem:[#allocation2 + $0x10] sm:$0xff]
    %v24 = vld [vmem:[#allocation2 + $0x18] sm:$0xff]
    %v25 = vld [vmem:[#allocation2 + $0x20] sm:$0xff]
    %v26 = vld [vmem:[#allocation2 + $0x28] sm:$0xff]
    %v27 = vld [vmem:[#allocation2 + $0x30] sm:$0xff]
    %v28 = vld [vmem:[#allocation2 + $0x38] sm:$0xff]
    %v29 = vmul.f32 %v21, 30.0
    %v30 = vmul.f32 %v22, 30.0
    %v31 = vmul.f32 %v23, 30.0
    %v32 = vmul.f32 %v24, 30.0
    %v33 = vmul.f32 %v25, 30.0
    %v34 = vmul.f32 %v26, 30.0
    %v35 = vmul.f32 %v27, 30.0
    %v36 = vmul.f32 %v28, 30.0
    %v37 = vand.u32 2147483647, %v29
    %vm38 = vcmp.le.f32.partialorder %v37, 0.7853982
    %vm39 = vcmp.lt.s32.totalorder %v29, 0
    %v40 = vand.u32 %v29, 2139095040
    %v41 = vshrl.u32 %v40, 23
    %v42 = vsub.s32 %v41, 127
    %v43 = vand.u32 2147483647, %v29
    %v44 = vand.u32 %v43, 8388607
    %v45 = vor.u32 %v44, 8388608
    %v46 = vsub.s32 0, %v45
    %v47 = vadd.s32 %v42, 1
    %vm48 = vcmp.gt.s32.totalorder %v47, 0
    %v49 = vsel %vm48, %v47, 0
    %v50 = vshrl.u32 %v49, 5
    %v51 = vand.u32 %v49, 31
    %v52 = vsub.s32 32, %v51
    %v53 = vshrl.u32 683565275, %v52
    %v54 = vshll.u32 683565275, %v51
    %v55 = vshrl.u32 2475754826, %v52
    %v56 = vor.u32 %v54, %v55
    %v57 = vshll.u32 2475754826, %v51
    %v58 = vshrl.u32 2131351028, %v52
    %v59 = vor.u32 %v57, %v58
    %v60 = vshll.u32 2131351028, %v51
    %v61 = vshrl.u32 2102212464, %v52
    %v62 = vor.u32 %v60, %v61
    %v63 = vshll.u32 2102212464, %v51
    %v64 = vshrl.u32 920167782, %v52
    %v65 = vor.u32 %v63, %v64
    %v66 = vshll.u32 920167782, %v51
    %v67 = vshrl.u32 1326507024, %v52
    %v68 = vor.u32 %v66, %v67
    %vm69 = vcmp.lt.s32.totalorder %v50, 1
    %vm70 = vcmp.lt.s32.totalorder %v50, 2
    %vm71 = vcmp.lt.s32.totalorder %v50, 3
    %vm72 = vcmp.lt.s32.totalorder %v50, 4
    %v73 = vsel %vm69, %v53, %v56
    %v74 = vsel %vm72, %v62, 2102212464
    %v75 = vsel %vm71, %v59, %v74
    %v76 = vsel %vm70, %v73, %v75
    %v77 = vsel %vm69, %v56, %v59
    %v78 = vsel %vm72, %v65, 920167782
    %v79 = vsel %vm71, %v62, %v78
    %v80 = vsel %vm70, %v77, %v79
    %v81 = vsel %vm69, %v59, %v62
    %v82 = vsel %vm72, %v68, 1326507024
    %v83 = vsel %vm71, %v65, %v82
    %v84 = vsel %vm70, %v81, %v83
    %v85 = vshll.u32 %v45, 8
    %v86 = vmul.u32.u64.compose %v85, %v84
    %v87 = vextract.low.u32 %v86
    %v88 = vextract.high.u32 %v86
    %v89 = vmul.u32.u64.compose %v85, %v80
    %v90 = vextract.low.u32 %v89
    %v91 = vextract.high.u32 %v89
    %v92 = vmul.u32 %v85, %v76
    %v93 = vadd.s32 %v88, %v90
    %vm94 = vc.u32 %v88, %v90
    %v95 = vadd.s32 %v91, 1
    %v96 = vsel %vm94, %v95, %v91
    %v97 = vadd.s32 %v92, %v96
    %v98 = vadd.s32 %v97, 536870912
    %v99 = vshrl.u32 %v98, 30
    %v100 = vshll.u32 %v99, 30
    %v101 = vsub.s32 %v97, %v100
    %vm102 = vcmp.lt.s32.totalorder %v101, 0
    %v103 = vsub.s32 0, %v101
    %v104 = vsel %vm102, %v103, %v101
    %v105 = vclz %v104
    %v106 = vsub.s32 %v105, 2
    %vm107 = vcmp.gt.s32.totalorder 0, %v106
    %v108 = vsel %vm107, 0, %v106
    %v109 = vsub.s32 32, %v108
    %v110 = vshll.u32 %v101, %v108
    %v111 = vshrl.u32 %v93, %v109
    %v112 = vor.u32 %v110, %v111
    %v113 = vsub.s32 4294967266, %v108
    %v114 = vadd.s32 %v113, 127
    %v115 = vshll.u32 %v114, 23
    %v116 = vor.u32 4788187, %v115
    %v117 = vand.u32 2147483647, %v116
    %v119 = vcvt.s32.f32 %v112
    %v120 = vmul.f32 %v119, %v117
    %v121 = vxor.u32 %v120, 2147483648
    %v122 = vsel %vm39, %v121, %v120
    %v123 = vsub.s32 4, %v99
    %v124 = vsel %vm39, %v123, %v99
    %v125 = vsel %vm38, %v29, %v122
    %v126 = vsel %vm38, 0, %v124
    %v127 = vcosq.f32.pop %v125
    %v128 = vsinq.f32.pop %v125
    %vm129 = vweird.f32 %v29
    %v130 = vadd.s32 %v126, 3
    %v131 = vand.u32 %v130, 3
    %vm132 = vcmp.lt.s32.totalorder %v131, 2
    %vm133 = vcmp.eq.s32.totalorder %v131, 0
    %v134 = vxor.u32 %v128, 2147483648
    %v135 = vsel %vm133, %v127, %v134
    %vm136 = vcmp.eq.s32.totalorder %v131, 2
    %v137 = vxor.u32 %v127, 2147483648
    %v138 = vsel %vm136, %v137, %v128
    %v139 = vsel %vm132, %v135, %v138
    %v140 = vsel %vm129, nan, %v139
    %v141 = vand.u32 2147483647, %v30
    %vm142 = vcmp.le.f32.partialorder %v141, 0.7853982
    %vm143 = vcmp.lt.s32.totalorder %v30, 0
    %v144 = vand.u32 %v30, 2139095040
    %v145 = vshrl.u32 %v144, 23
    %v146 = vsub.s32 %v145, 127
    %v147 = vand.u32 2147483647, %v30
    %v148 = vand.u32 %v147, 8388607
    %v149 = vor.u32 %v148, 8388608
    %v150 = vsub.s32 0, %v149
    %v151 = vadd.s32 %v146, 1
    %vm152 = vcmp.gt.s32.totalorder %v151, 0
    %v153 = vsel %vm152, %v151, 0
    %v154 = vshrl.u32 %v153, 5
    %v155 = vand.u32 %v153, 31
    %v156 = vsub.s32 32, %v155
    %v157 = vshrl.u32 683565275, %v156
    %v158 = vshll.u32 683565275, %v155
    %v159 = vshrl.u32 2475754826, %v156
    %v160 = vor.u32 %v158, %v159
    %v161 = vshll.u32 2475754826, %v155
    %v162 = vshrl.u32 2131351028, %v156
    %v163 = vor.u32 %v161, %v162
    %v164 = vshll.u32 2131351028, %v155
    %v165 = vshrl.u32 2102212464, %v156
    %v166 = vor.u32 %v164, %v165
    %v167 = vshll.u32 2102212464, %v155
    %v168 = vshrl.u32 920167782, %v156
    %v169 = vor.u32 %v167, %v168
    %v170 = vshll.u32 920167782, %v155
    %v171 = vshrl.u32 1326507024, %v156
    %v172 = vor.u32 %v170, %v171
    %vm173 = vcmp.lt.s32.totalorder %v154, 1
    %vm174 = vcmp.lt.s32.totalorder %v154, 2
    %vm175 = vcmp.lt.s32.totalorder %v154, 3
    %vm176 = vcmp.lt.s32.totalorder %v154, 4
    %v177 = vsel %vm173, %v157, %v160
    %v178 = vsel %vm176, %v166, 2102212464
    %v179 = vsel %vm175, %v163, %v178
    %v180 = vsel %vm174, %v177, %v179
    %v181 = vsel %vm173, %v160, %v163
    %v182 = vsel %vm176, %v169, 920167782
    %v183 = vsel %vm175, %v166, %v182
    %v184 = vsel %vm174, %v181, %v183
    %v185 = vsel %vm173, %v163, %v166
    %v186 = vsel %vm176, %v172, 1326507024
    %v187 = vsel %vm175, %v169, %v186
    %v188 = vsel %vm174, %v185, %v187
    %v189 = vshll.u32 %v149, 8
    %v190 = vmul.u32.u64.compose %v189, %v188
    %v191 = vextract.low.u32 %v190
    %v192 = vextract.high.u32 %v190
    %v193 = vmul.u32.u64.compose %v189, %v184
    %v194 = vextract.low.u32 %v193
    %v195 = vextract.high.u32 %v193
    %v196 = vmul.u32 %v189, %v180
    %v197 = vadd.s32 %v192, %v194
    %vm198 = vc.u32 %v192, %v194
    %v199 = vadd.s32 %v195, 1
    %v200 = vsel %vm198, %v199, %v195
    %v201 = vadd.s32 %v196, %v200
    %v202 = vadd.s32 %v201, 536870912
    %v203 = vshrl.u32 %v202, 30
    %v204 = vshll.u32 %v203, 30
    %v205 = vsub.s32 %v201, %v204
    %vm206 = vcmp.lt.s32.totalorder %v205, 0
    %v207 = vsub.s32 0, %v205
    %v208 = vsel %vm206, %v207, %v205
    %v209 = vclz %v208
    %v210 = vsub.s32 %v209, 2
    %vm211 = vcmp.gt.s32.totalorder 0, %v210
    %v212 = vsel %vm211, 0, %v210
    %v213 = vsub.s32 32, %v212
    %v214 = vshll.u32 %v205, %v212
    %v215 = vshrl.u32 %v197, %v213
    %v216 = vor.u32 %v214, %v215
    %v217 = vsub.s32 4294967266, %v212
    %v218 = vadd.s32 %v217, 127
    %v219 = vshll.u32 %v218, 23
    %v220 = vor.u32 4788187, %v219
    %v221 = vand.u32 2147483647, %v220
    %v223 = vcvt.s32.f32 %v216
    %v224 = vmul.f32 %v223, %v221
    %v225 = vxor.u32 %v224, 2147483648
    %v226 = vsel %vm143, %v225, %v224
    %v227 = vsub.s32 4, %v203
    %v228 = vsel %vm143, %v227, %v203
    %v229 = vsel %vm142, %v30, %v226
    %v230 = vsel %vm142, 0, %v228
    %v231 = vcosq.f32.pop %v229
    %v232 = vsinq.f32.pop %v229
    %vm233 = vweird.f32 %v30
    %v234 = vadd.s32 %v230, 3
    %v235 = vand.u32 %v234, 3
    %vm236 = vcmp.lt.s32.totalorder %v235, 2
    %vm237 = vcmp.eq.s32.totalorder %v235, 0
    %v238 = vxor.u32 %v232, 2147483648
    %v239 = vsel %vm237, %v231, %v238
    %vm240 = vcmp.eq.s32.totalorder %v235, 2
    %v241 = vxor.u32 %v231, 2147483648
    %v242 = vsel %vm240, %v241, %v232
    %v243 = vsel %vm236, %v239, %v242
    %v244 = vsel %vm233, nan, %v243
    %v245 = vand.u32 2147483647, %v31
    %vm246 = vcmp.le.f32.partialorder %v245, 0.7853982
    %vm247 = vcmp.lt.s32.totalorder %v31, 0
    %v248 = vand.u32 %v31, 2139095040
    %v249 = vshrl.u32 %v248, 23
    %v250 = vsub.s32 %v249, 127
    %v251 = vand.u32 2147483647, %v31
    %v252 = vand.u32 %v251, 8388607
    %v253 = vor.u32 %v252, 8388608
    %v254 = vsub.s32 0, %v253
    %v255 = vadd.s32 %v250, 1
    %vm256 = vcmp.gt.s32.totalorder %v255, 0
    %v257 = vsel %vm256, %v255, 0
    %v258 = vshrl.u32 %v257, 5
    %v259 = vand.u32 %v257, 31
    %v260 = vsub.s32 32, %v259
    %v261 = vshrl.u32 683565275, %v260
    %v262 = vshll.u32 683565275, %v259
    %v263 = vshrl.u32 2475754826, %v260
    %v264 = vor.u32 %v262, %v263
    %v265 = vshll.u32 2475754826, %v259
    %v266 = vshrl.u32 2131351028, %v260
    %v267 = vor.u32 %v265, %v266
    %v268 = vshll.u32 2131351028, %v259
    %v269 = vshrl.u32 2102212464, %v260
    %v270 = vor.u32 %v268, %v269
    %v271 = vshll.u32 2102212464, %v259
    %v272 = vshrl.u32 920167782, %v260
    %v273 = vor.u32 %v271, %v272
    %v274 = vshll.u32 920167782, %v259
    %v275 = vshrl.u32 1326507024, %v260
    %v276 = vor.u32 %v274, %v275
    %vm277 = vcmp.lt.s32.totalorder %v258, 1
    %vm278 = vcmp.lt.s32.totalorder %v258, 2
    %vm279 = vcmp.lt.s32.totalorder %v258, 3
    %vm280 = vcmp.lt.s32.totalorder %v258, 4
    %v281 = vsel %vm277, %v261, %v264
    %v282 = vsel %vm280, %v270, 2102212464
    %v283 = vsel %vm279, %v267, %v282
    %v284 = vsel %vm278, %v281, %v283
    %v285 = vsel %vm277, %v264, %v267
    %v286 = vsel %vm280, %v273, 920167782
    %v287 = vsel %vm279, %v270, %v286
    %v288 = vsel %vm278, %v285, %v287
    %v289 = vsel %vm277, %v267, %v270
    %v290 = vsel %vm280, %v276, 1326507024
    %v291 = vsel %vm279, %v273, %v290
    %v292 = vsel %vm278, %v289, %v291
    %v293 = vshll.u32 %v253, 8
    %v294 = vmul.u32.u64.compose %v293, %v292
    %v295 = vextract.low.u32 %v294
    %v296 = vextract.high.u32 %v294
    %v297 = vmul.u32.u64.compose %v293, %v288
    %v298 = vextract.low.u32 %v297
    %v299 = vextract.high.u32 %v297
    %v300 = vmul.u32 %v293, %v284
    %v301 = vadd.s32 %v296, %v298
    %vm302 = vc.u32 %v296, %v298
    %v303 = vadd.s32 %v299, 1
    %v304 = vsel %vm302, %v303, %v299
    %v305 = vadd.s32 %v300, %v304
    %v306 = vadd.s32 %v305, 536870912
    %v307 = vshrl.u32 %v306, 30
    %v308 = vshll.u32 %v307, 30
    %v309 = vsub.s32 %v305, %v308
    %vm310 = vcmp.lt.s32.totalorder %v309, 0
    %v311 = vsub.s32 0, %v309
    %v312 = vsel %vm310, %v311, %v309
    %v313 = vclz %v312
    %v314 = vsub.s32 %v313, 2
    %vm315 = vcmp.gt.s32.totalorder 0, %v314
    %v316 = vsel %vm315, 0, %v314
    %v317 = vsub.s32 32, %v316
    %v318 = vshll.u32 %v309, %v316
    %v319 = vshrl.u32 %v301, %v317
    %v320 = vor.u32 %v318, %v319
    %v321 = vsub.s32 4294967266, %v316
    %v322 = vadd.s32 %v321, 127
    %v323 = vshll.u32 %v322, 23
    %v324 = vor.u32 4788187, %v323
    %v325 = vand.u32 2147483647, %v324
    %v327 = vcvt.s32.f32 %v320
    %v328 = vmul.f32 %v327, %v325
    %v329 = vxor.u32 %v328, 2147483648
    %v330 = vsel %vm247, %v329, %v328
    %v331 = vsub.s32 4, %v307
    %v332 = vsel %vm247, %v331, %v307
    %v333 = vsel %vm246, %v31, %v330
    %v334 = vsel %vm246, 0, %v332
    %v335 = vcosq.f32.pop %v333
    %v336 = vsinq.f32.pop %v333
    %vm337 = vweird.f32 %v31
    %v338 = vadd.s32 %v334, 3
    %v339 = vand.u32 %v338, 3
    %vm340 = vcmp.lt.s32.totalorder %v339, 2
    %vm341 = vcmp.eq.s32.totalorder %v339, 0
    %v342 = vxor.u32 %v336, 2147483648
    %v343 = vsel %vm341, %v335, %v342
    %vm344 = vcmp.eq.s32.totalorder %v339, 2
    %v345 = vxor.u32 %v335, 2147483648
    %v346 = vsel %vm344, %v345, %v336
    %v347 = vsel %vm340, %v343, %v346
    %v348 = vsel %vm337, nan, %v347
    %v349 = vand.u32 2147483647, %v32
    %vm350 = vcmp.le.f32.partialorder %v349, 0.7853982
    %vm351 = vcmp.lt.s32.totalorder %v32, 0
    %v352 = vand.u32 %v32, 2139095040
    %v353 = vshrl.u32 %v352, 23
    %v354 = vsub.s32 %v353, 127
    %v355 = vand.u32 2147483647, %v32
    %v356 = vand.u32 %v355, 8388607
    %v357 = vor.u32 %v356, 8388608
    %v358 = vsub.s32 0, %v357
    %v359 = vadd.s32 %v354, 1
    %vm360 = vcmp.gt.s32.totalorder %v359, 0
    %v361 = vsel %vm360, %v359, 0
    %v362 = vshrl.u32 %v361, 5
    %v363 = vand.u32 %v361, 31
    %v364 = vsub.s32 32, %v363
    %v365 = vshrl.u32 683565275, %v364
    %v366 = vshll.u32 683565275, %v363
    %v367 = vshrl.u32 2475754826, %v364
    %v368 = vor.u32 %v366, %v367
    %v369 = vshll.u32 2475754826, %v363
    %v370 = vshrl.u32 2131351028, %v364
    %v371 = vor.u32 %v369, %v370
    %v372 = vshll.u32 2131351028, %v363
    %v373 = vshrl.u32 2102212464, %v364
    %v374 = vor.u32 %v372, %v373
    %v375 = vshll.u32 2102212464, %v363
    %v376 = vshrl.u32 920167782, %v364
    %v377 = vor.u32 %v375, %v376
    %v378 = vshll.u32 920167782, %v363
    %v379 = vshrl.u32 1326507024, %v364
    %v380 = vor.u32 %v378, %v379
    %vm381 = vcmp.lt.s32.totalorder %v362, 1
    %vm382 = vcmp.lt.s32.totalorder %v362, 2
    %vm383 = vcmp.lt.s32.totalorder %v362, 3
    %vm384 = vcmp.lt.s32.totalorder %v362, 4
    %v385 = vsel %vm381, %v365, %v368
    %v386 = vsel %vm384, %v374, 2102212464
    %v387 = vsel %vm383, %v371, %v386
    %v388 = vsel %vm382, %v385, %v387
    %v389 = vsel %vm381, %v368, %v371
    %v390 = vsel %vm384, %v377, 920167782
    %v391 = vsel %vm383, %v374, %v390
    %v392 = vsel %vm382, %v389, %v391
    %v393 = vsel %vm381, %v371, %v374
    %v394 = vsel %vm384, %v380, 1326507024
    %v395 = vsel %vm383, %v377, %v394
    %v396 = vsel %vm382, %v393, %v395
    %v397 = vshll.u32 %v357, 8
    %v398 = vmul.u32.u64.compose %v397, %v396
    %v399 = vextract.low.u32 %v398
    %v400 = vextract.high.u32 %v398
    %v401 = vmul.u32.u64.compose %v397, %v392
    %v402 = vextract.low.u32 %v401
    %v403 = vextract.high.u32 %v401
    %v404 = vmul.u32 %v397, %v388
    %v405 = vadd.s32 %v400, %v402
    %vm406 = vc.u32 %v400, %v402
    %v407 = vadd.s32 %v403, 1
    %v408 = vsel %vm406, %v407, %v403
    %v409 = vadd.s32 %v404, %v408
    %v410 = vadd.s32 %v409, 536870912
    %v411 = vshrl.u32 %v410, 30
    %v412 = vshll.u32 %v411, 30
    %v413 = vsub.s32 %v409, %v412
    %vm414 = vcmp.lt.s32.totalorder %v413, 0
    %v415 = vsub.s32 0, %v413
    %v416 = vsel %vm414, %v415, %v413
    %v417 = vclz %v416
    %v418 = vsub.s32 %v417, 2
    %vm419 = vcmp.gt.s32.totalorder 0, %v418
    %v420 = vsel %vm419, 0, %v418
    %v421 = vsub.s32 32, %v420
    %v422 = vshll.u32 %v413, %v420
    %v423 = vshrl.u32 %v405, %v421
    %v424 = vor.u32 %v422, %v423
    %v425 = vsub.s32 4294967266, %v420
    %v426 = vadd.s32 %v425, 127
    %v427 = vshll.u32 %v426, 23
    %v428 = vor.u32 4788187, %v427
    %v429 = vand.u32 2147483647, %v428
    %v431 = vcvt.s32.f32 %v424
    %v432 = vmul.f32 %v431, %v429
    %v433 = vxor.u32 %v432, 2147483648
    %v434 = vsel %vm351, %v433, %v432
    %v435 = vsub.s32 4, %v411
    %v436 = vsel %vm351, %v435, %v411
    %v437 = vsel %vm350, %v32, %v434
    %v438 = vsel %vm350, 0, %v436
    %v439 = vcosq.f32.pop %v437
    %v440 = vsinq.f32.pop %v437
    %vm441 = vweird.f32 %v32
    %v442 = vadd.s32 %v438, 3
    %v443 = vand.u32 %v442, 3
    %vm444 = vcmp.lt.s32.totalorder %v443, 2
    %vm445 = vcmp.eq.s32.totalorder %v443, 0
    %v446 = vxor.u32 %v440, 2147483648
    %v447 = vsel %vm445, %v439, %v446
    %vm448 = vcmp.eq.s32.totalorder %v443, 2
    %v449 = vxor.u32 %v439, 2147483648
    %v450 = vsel %vm448, %v449, %v440
    %v451 = vsel %vm444, %v447, %v450
    %v452 = vsel %vm441, nan, %v451
    %v453 = vand.u32 2147483647, %v33
    %vm454 = vcmp.le.f32.partialorder %v453, 0.7853982
    %vm455 = vcmp.lt.s32.totalorder %v33, 0
    %v456 = vand.u32 %v33, 2139095040
    %v457 = vshrl.u32 %v456, 23
    %v458 = vsub.s32 %v457, 127
    %v459 = vand.u32 2147483647, %v33
    %v460 = vand.u32 %v459, 8388607
    %v461 = vor.u32 %v460, 8388608
    %v462 = vsub.s32 0, %v461
    %v463 = vadd.s32 %v458, 1
    %vm464 = vcmp.gt.s32.totalorder %v463, 0
    %v465 = vsel %vm464, %v463, 0
    %v466 = vshrl.u32 %v465, 5
    %v467 = vand.u32 %v465, 31
    %v468 = vsub.s32 32, %v467
    %v469 = vshrl.u32 683565275, %v468
    %v470 = vshll.u32 683565275, %v467
    %v471 = vshrl.u32 2475754826, %v468
    %v472 = vor.u32 %v470, %v471
    %v473 = vshll.u32 2475754826, %v467
    %v474 = vshrl.u32 2131351028, %v468
    %v475 = vor.u32 %v473, %v474
    %v476 = vshll.u32 2131351028, %v467
    %v477 = vshrl.u32 2102212464, %v468
    %v478 = vor.u32 %v476, %v477
    %v479 = vshll.u32 2102212464, %v467
    %v480 = vshrl.u32 920167782, %v468
    %v481 = vor.u32 %v479, %v480
    %v482 = vshll.u32 920167782, %v467
    %v483 = vshrl.u32 1326507024, %v468
    %v484 = vor.u32 %v482, %v483
    %vm485 = vcmp.lt.s32.totalorder %v466, 1
    %vm486 = vcmp.lt.s32.totalorder %v466, 2
    %vm487 = vcmp.lt.s32.totalorder %v466, 3
    %vm488 = vcmp.lt.s32.totalorder %v466, 4
    %v489 = vsel %vm485, %v469, %v472
    %v490 = vsel %vm488, %v478, 2102212464
    %v491 = vsel %vm487, %v475, %v490
    %v492 = vsel %vm486, %v489, %v491
    %v493 = vsel %vm485, %v472, %v475
    %v494 = vsel %vm488, %v481, 920167782
    %v495 = vsel %vm487, %v478, %v494
    %v496 = vsel %vm486, %v493, %v495
    %v497 = vsel %vm485, %v475, %v478
    %v498 = vsel %vm488, %v484, 1326507024
    %v499 = vsel %vm487, %v481, %v498
    %v500 = vsel %vm486, %v497, %v499
    %v501 = vshll.u32 %v461, 8
    %v502 = vmul.u32.u64.compose %v501, %v500
    %v503 = vextract.low.u32 %v502
    %v504 = vextract.high.u32 %v502
    %v505 = vmul.u32.u64.compose %v501, %v496
    %v506 = vextract.low.u32 %v505
    %v507 = vextract.high.u32 %v505
    %v508 = vmul.u32 %v501, %v492
    %v509 = vadd.s32 %v504, %v506
    %vm510 = vc.u32 %v504, %v506
    %v511 = vadd.s32 %v507, 1
    %v512 = vsel %vm510, %v511, %v507
    %v513 = vadd.s32 %v508, %v512
    %v514 = vadd.s32 %v513, 536870912
    %v515 = vshrl.u32 %v514, 30
    %v516 = vshll.u32 %v515, 30
    %v517 = vsub.s32 %v513, %v516
    %vm518 = vcmp.lt.s32.totalorder %v517, 0
    %v519 = vsub.s32 0, %v517
    %v520 = vsel %vm518, %v519, %v517
    %v521 = vclz %v520
    %v522 = vsub.s32 %v521, 2
    %vm523 = vcmp.gt.s32.totalorder 0, %v522
    %v524 = vsel %vm523, 0, %v522
    %v525 = vsub.s32 32, %v524
    %v526 = vshll.u32 %v517, %v524
    %v527 = vshrl.u32 %v509, %v525
    %v528 = vor.u32 %v526, %v527
    %v529 = vsub.s32 4294967266, %v524
    %v530 = vadd.s32 %v529, 127
    %v531 = vshll.u32 %v530, 23
    %v532 = vor.u32 4788187, %v531
    %v533 = vand.u32 2147483647, %v532
    %v535 = vcvt.s32.f32 %v528
    %v536 = vmul.f32 %v535, %v533
    %v537 = vxor.u32 %v536, 2147483648
    %v538 = vsel %vm455, %v537, %v536
    %v539 = vsub.s32 4, %v515
    %v540 = vsel %vm455, %v539, %v515
    %v541 = vsel %vm454, %v33, %v538
    %v542 = vsel %vm454, 0, %v540
    %v543 = vcosq.f32.pop %v541
    %v544 = vsinq.f32.pop %v541
    %vm545 = vweird.f32 %v33
    %v546 = vadd.s32 %v542, 3
    %v547 = vand.u32 %v546, 3
    %vm548 = vcmp.lt.s32.totalorder %v547, 2
    %vm549 = vcmp.eq.s32.totalorder %v547, 0
    %v550 = vxor.u32 %v544, 2147483648
    %v551 = vsel %vm549, %v543, %v550
    %vm552 = vcmp.eq.s32.totalorder %v547, 2
    %v553 = vxor.u32 %v543, 2147483648
    %v554 = vsel %vm552, %v553, %v544
    %v555 = vsel %vm548, %v551, %v554
    %v556 = vsel %vm545, nan, %v555
    %v557 = vand.u32 2147483647, %v34
    %vm558 = vcmp.le.f32.partialorder %v557, 0.7853982
    %vm559 = vcmp.lt.s32.totalorder %v34, 0
    %v560 = vand.u32 %v34, 2139095040
    %v561 = vshrl.u32 %v560, 23
    %v562 = vsub.s32 %v561, 127
    %v563 = vand.u32 2147483647, %v34
    %v564 = vand.u32 %v563, 8388607
    %v565 = vor.u32 %v564, 8388608
    %v566 = vsub.s32 0, %v565
    %v567 = vadd.s32 %v562, 1
    %vm568 = vcmp.gt.s32.totalorder %v567, 0
    %v569 = vsel %vm568, %v567, 0
    %v570 = vshrl.u32 %v569, 5
    %v571 = vand.u32 %v569, 31
    %v572 = vsub.s32 32, %v571
    %v573 = vshrl.u32 683565275, %v572
    %v574 = vshll.u32 683565275, %v571
    %v575 = vshrl.u32 2475754826, %v572
    %v576 = vor.u32 %v574, %v575
    %v577 = vshll.u32 2475754826, %v571
    %v578 = vshrl.u32 2131351028, %v572
    %v579 = vor.u32 %v577, %v578
    %v580 = vshll.u32 2131351028, %v571
    %v581 = vshrl.u32 2102212464, %v572
    %v582 = vor.u32 %v580, %v581
    %v583 = vshll.u32 2102212464, %v571
    %v584 = vshrl.u32 920167782, %v572
    %v585 = vor.u32 %v583, %v584
    %v586 = vshll.u32 920167782, %v571
    %v587 = vshrl.u32 1326507024, %v572
    %v588 = vor.u32 %v586, %v587
    %vm589 = vcmp.lt.s32.totalorder %v570, 1
    %vm590 = vcmp.lt.s32.totalorder %v570, 2
    %vm591 = vcmp.lt.s32.totalorder %v570, 3
    %vm592 = vcmp.lt.s32.totalorder %v570, 4
    %v593 = vsel %vm589, %v573, %v576
    %v594 = vsel %vm592, %v582, 2102212464
    %v595 = vsel %vm591, %v579, %v594
    %v596 = vsel %vm590, %v593, %v595
    %v597 = vsel %vm589, %v576, %v579
    %v598 = vsel %vm592, %v585, 920167782
    %v599 = vsel %vm591, %v582, %v598
    %v600 = vsel %vm590, %v597, %v599
    %v601 = vsel %vm589, %v579, %v582
    %v602 = vsel %vm592, %v588, 1326507024
    %v603 = vsel %vm591, %v585, %v602
    %v604 = vsel %vm590, %v601, %v603
    %v605 = vshll.u32 %v565, 8
    %v606 = vmul.u32.u64.compose %v605, %v604
    %v607 = vextract.low.u32 %v606
    %v608 = vextract.high.u32 %v606
    %v609 = vmul.u32.u64.compose %v605, %v600
    %v610 = vextract.low.u32 %v609
    %v611 = vextract.high.u32 %v609
    %v612 = vmul.u32 %v605, %v596
    %v613 = vadd.s32 %v608, %v610
    %vm614 = vc.u32 %v608, %v610
    %v615 = vadd.s32 %v611, 1
    %v616 = vsel %vm614, %v615, %v611
    %v617 = vadd.s32 %v612, %v616
    %v618 = vadd.s32 %v617, 536870912
    %v619 = vshrl.u32 %v618, 30
    %v620 = vshll.u32 %v619, 30
    %v621 = vsub.s32 %v617, %v620
    %vm622 = vcmp.lt.s32.totalorder %v621, 0
    %v623 = vsub.s32 0, %v621
    %v624 = vsel %vm622, %v623, %v621
    %v625 = vclz %v624
    %v626 = vsub.s32 %v625, 2
    %vm627 = vcmp.gt.s32.totalorder 0, %v626
    %v628 = vsel %vm627, 0, %v626
    %v629 = vsub.s32 32, %v628
    %v630 = vshll.u32 %v621, %v628
    %v631 = vshrl.u32 %v613, %v629
    %v632 = vor.u32 %v630, %v631
    %v633 = vsub.s32 4294967266, %v628
    %v634 = vadd.s32 %v633, 127
    %v635 = vshll.u32 %v634, 23
    %v636 = vor.u32 4788187, %v635
    %v637 = vand.u32 2147483647, %v636
    %v639 = vcvt.s32.f32 %v632
    %v640 = vmul.f32 %v639, %v637
    %v641 = vxor.u32 %v640, 2147483648
    %v642 = vsel %vm559, %v641, %v640
    %v643 = vsub.s32 4, %v619
    %v644 = vsel %vm559, %v643, %v619
    %v645 = vsel %vm558, %v34, %v642
    %v646 = vsel %vm558, 0, %v644
    %v647 = vcosq.f32.pop %v645
    %v648 = vsinq.f32.pop %v645
    %vm649 = vweird.f32 %v34
    %v650 = vadd.s32 %v646, 3
    %v651 = vand.u32 %v650, 3
    %vm652 = vcmp.lt.s32.totalorder %v651, 2
    %vm653 = vcmp.eq.s32.totalorder %v651, 0
    %v654 = vxor.u32 %v648, 2147483648
    %v655 = vsel %vm653, %v647, %v654
    %vm656 = vcmp.eq.s32.totalorder %v651, 2
    %v657 = vxor.u32 %v647, 2147483648
    %v658 = vsel %vm656, %v657, %v648
    %v659 = vsel %vm652, %v655, %v658
    %v660 = vsel %vm649, nan, %v659
    %v661 = vand.u32 2147483647, %v35
    %vm662 = vcmp.le.f32.partialorder %v661, 0.7853982
    %vm663 = vcmp.lt.s32.totalorder %v35, 0
    %v664 = vand.u32 %v35, 2139095040
    %v665 = vshrl.u32 %v664, 23
    %v666 = vsub.s32 %v665, 127
    %v667 = vand.u32 2147483647, %v35
    %v668 = vand.u32 %v667, 8388607
    %v669 = vor.u32 %v668, 8388608
    %v670 = vsub.s32 0, %v669
    %v671 = vadd.s32 %v666, 1
    %vm672 = vcmp.gt.s32.totalorder %v671, 0
    %v673 = vsel %vm672, %v671, 0
    %v674 = vshrl.u32 %v673, 5
    %v675 = vand.u32 %v673, 31
    %v676 = vsub.s32 32, %v675
    %v677 = vshrl.u32 683565275, %v676
    %v678 = vshll.u32 683565275, %v675
    %v679 = vshrl.u32 2475754826, %v676
    %v680 = vor.u32 %v678, %v679
    %v681 = vshll.u32 2475754826, %v675
    %v682 = vshrl.u32 2131351028, %v676
    %v683 = vor.u32 %v681, %v682
    %v684 = vshll.u32 2131351028, %v675
    %v685 = vshrl.u32 2102212464, %v676
    %v686 = vor.u32 %v684, %v685
    %v687 = vshll.u32 2102212464, %v675
    %v688 = vshrl.u32 920167782, %v676
    %v689 = vor.u32 %v687, %v688
    %v690 = vshll.u32 920167782, %v675
    %v691 = vshrl.u32 1326507024, %v676
    %v692 = vor.u32 %v690, %v691
    %vm693 = vcmp.lt.s32.totalorder %v674, 1
    %vm694 = vcmp.lt.s32.totalorder %v674, 2
    %vm695 = vcmp.lt.s32.totalorder %v674, 3
    %vm696 = vcmp.lt.s32.totalorder %v674, 4
    %v697 = vsel %vm693, %v677, %v680
    %v698 = vsel %vm696, %v686, 2102212464
    %v699 = vsel %vm695, %v683, %v698
    %v700 = vsel %vm694, %v697, %v699
    %v701 = vsel %vm693, %v680, %v683
    %v702 = vsel %vm696, %v689, 920167782
    %v703 = vsel %vm695, %v686, %v702
    %v704 = vsel %vm694, %v701, %v703
    %v705 = vsel %vm693, %v683, %v686
    %v706 = vsel %vm696, %v692, 1326507024
    %v707 = vsel %vm695, %v689, %v706
    %v708 = vsel %vm694, %v705, %v707
    %v709 = vshll.u32 %v669, 8
    %v710 = vmul.u32.u64.compose %v709, %v708
    %v711 = vextract.low.u32 %v710
    %v712 = vextract.high.u32 %v710
    %v713 = vmul.u32.u64.compose %v709, %v704
    %v714 = vextract.low.u32 %v713
    %v715 = vextract.high.u32 %v713
    %v716 = vmul.u32 %v709, %v700
    %v717 = vadd.s32 %v712, %v714
    %vm718 = vc.u32 %v712, %v714
    %v719 = vadd.s32 %v715, 1
    %v720 = vsel %vm718, %v719, %v715
    %v721 = vadd.s32 %v716, %v720
    %v722 = vadd.s32 %v721, 536870912
    %v723 = vshrl.u32 %v722, 30
    %v724 = vshll.u32 %v723, 30
    %v725 = vsub.s32 %v721, %v724
    %vm726 = vcmp.lt.s32.totalorder %v725, 0
    %v727 = vsub.s32 0, %v725
    %v728 = vsel %vm726, %v727, %v725
    %v729 = vclz %v728
    %v730 = vsub.s32 %v729, 2
    %vm731 = vcmp.gt.s32.totalorder 0, %v730
    %v732 = vsel %vm731, 0, %v730
    %v733 = vsub.s32 32, %v732
    %v734 = vshll.u32 %v725, %v732
    %v735 = vshrl.u32 %v717, %v733
    %v736 = vor.u32 %v734, %v735
    %v737 = vsub.s32 4294967266, %v732
    %v738 = vadd.s32 %v737, 127
    %v739 = vshll.u32 %v738, 23
    %v740 = vor.u32 4788187, %v739
    %v741 = vand.u32 2147483647, %v740
    %v743 = vcvt.s32.f32 %v736
    %v744 = vmul.f32 %v743, %v741
    %v745 = vxor.u32 %v744, 2147483648
    %v746 = vsel %vm663, %v745, %v744
    %v747 = vsub.s32 4, %v723
    %v748 = vsel %vm663, %v747, %v723
    %v749 = vsel %vm662, %v35, %v746
    %v750 = vsel %vm662, 0, %v748
    %v751 = vcosq.f32.pop %v749
    %v752 = vsinq.f32.pop %v749
    %vm753 = vweird.f32 %v35
    %v754 = vadd.s32 %v750, 3
    %v755 = vand.u32 %v754, 3
    %vm756 = vcmp.lt.s32.totalorder %v755, 2
    %vm757 = vcmp.eq.s32.totalorder %v755, 0
    %v758 = vxor.u32 %v752, 2147483648
    %v759 = vsel %vm757, %v751, %v758
    %vm760 = vcmp.eq.s32.totalorder %v755, 2
    %v761 = vxor.u32 %v751, 2147483648
    %v762 = vsel %vm760, %v761, %v752
    %v763 = vsel %vm756, %v759, %v762
    %v764 = vsel %vm753, nan, %v763
    %v765 = vand.u32 2147483647, %v36
    %vm766 = vcmp.le.f32.partialorder %v765, 0.7853982
    %vm767 = vcmp.lt.s32.totalorder %v36, 0
    %v768 = vand.u32 %v36, 2139095040
    %v769 = vshrl.u32 %v768, 23
    %v770 = vsub.s32 %v769, 127
    %v771 = vand.u32 2147483647, %v36
    %v772 = vand.u32 %v771, 8388607
    %v773 = vor.u32 %v772, 8388608
    %v774 = vsub.s32 0, %v773
    %v775 = vadd.s32 %v770, 1
    %vm776 = vcmp.gt.s32.totalorder %v775, 0
    %v777 = vsel %vm776, %v775, 0
    %v778 = vshrl.u32 %v777, 5
    %v779 = vand.u32 %v777, 31
    %v780 = vsub.s32 32, %v779
    %v781 = vshrl.u32 683565275, %v780
    %v782 = vshll.u32 683565275, %v779
    %v783 = vshrl.u32 2475754826, %v780
    %v784 = vor.u32 %v782, %v783
    %v785 = vshll.u32 2475754826, %v779
    %v786 = vshrl.u32 2131351028, %v780
    %v787 = vor.u32 %v785, %v786
    %v788 = vshll.u32 2131351028, %v779
    %v789 = vshrl.u32 2102212464, %v780
    %v790 = vor.u32 %v788, %v789
    %v791 = vshll.u32 2102212464, %v779
    %v792 = vshrl.u32 920167782, %v780
    %v793 = vor.u32 %v791, %v792
    %v794 = vshll.u32 920167782, %v779
    %v795 = vshrl.u32 1326507024, %v780
    %v796 = vor.u32 %v794, %v795
    %vm797 = vcmp.lt.s32.totalorder %v778, 1
    %vm798 = vcmp.lt.s32.totalorder %v778, 2
    %vm799 = vcmp.lt.s32.totalorder %v778, 3
    %vm800 = vcmp.lt.s32.totalorder %v778, 4
    %v801 = vsel %vm797, %v781, %v784
    %v802 = vsel %vm800, %v790, 2102212464
    %v803 = vsel %vm799, %v787, %v802
    %v804 = vsel %vm798, %v801, %v803
    %v805 = vsel %vm797, %v784, %v787
    %v806 = vsel %vm800, %v793, 920167782
    %v807 = vsel %vm799, %v790, %v806
    %v808 = vsel %vm798, %v805, %v807
    %v809 = vsel %vm797, %v787, %v790
    %v810 = vsel %vm800, %v796, 1326507024
    %v811 = vsel %vm799, %v793, %v810
    %v812 = vsel %vm798, %v809, %v811
    %v813 = vshll.u32 %v773, 8
    %v814 = vmul.u32.u64.compose %v813, %v812
    %v815 = vextract.low.u32 %v814
    %v816 = vextract.high.u32 %v814
    %v817 = vmul.u32.u64.compose %v813, %v808
    %v818 = vextract.low.u32 %v817
    %v819 = vextract.high.u32 %v817
    %v820 = vmul.u32 %v813, %v804
    %v821 = vadd.s32 %v816, %v818
    %vm822 = vc.u32 %v816, %v818
    %v823 = vadd.s32 %v819, 1
    %v824 = vsel %vm822, %v823, %v819
    %v825 = vadd.s32 %v820, %v824
    %v826 = vadd.s32 %v825, 536870912
    %v827 = vshrl.u32 %v826, 30
    %v828 = vshll.u32 %v827, 30
    %v829 = vsub.s32 %v825, %v828
    %vm830 = vcmp.lt.s32.totalorder %v829, 0
    %v831 = vsub.s32 0, %v829
    %v832 = vsel %vm830, %v831, %v829
    %v833 = vclz %v832
    %v834 = vsub.s32 %v833, 2
    %vm835 = vcmp.gt.s32.totalorder 0, %v834
    %v836 = vsel %vm835, 0, %v834
    %v837 = vsub.s32 32, %v836
    %v838 = vshll.u32 %v829, %v836
    %v839 = vshrl.u32 %v821, %v837
    %v840 = vor.u32 %v838, %v839
    %v841 = vsub.s32 4294967266, %v836
    %v842 = vadd.s32 %v841, 127
    %v843 = vshll.u32 %v842, 23
    %v844 = vor.u32 4788187, %v843
    %v845 = vand.u32 2147483647, %v844
    %v847 = vcvt.s32.f32 %v840
    %v848 = vmul.f32 %v847, %v845
    %v849 = vxor.u32 %v848, 2147483648
    %v850 = vsel %vm767, %v849, %v848
    %v851 = vsub.s32 4, %v827
    %v852 = vsel %vm767, %v851, %v827
    %v853 = vsel %vm766, %v36, %v850
    %v854 = vsel %vm766, 0, %v852
    %v855 = vcosq.f32.pop %v853
    %v856 = vsinq.f32.pop %v853
    %vm857 = vweird.f32 %v36
    %v858 = vadd.s32 %v854, 3
    %v859 = vand.u32 %v858, 3
    %vm860 = vcmp.lt.s32.totalorder %v859, 2
    %vm861 = vcmp.eq.s32.totalorder %v859, 0
    %v862 = vxor.u32 %v856, 2147483648
    %v863 = vsel %vm861, %v855, %v862
    %vm864 = vcmp.eq.s32.totalorder %v859, 2
    %v865 = vxor.u32 %v855, 2147483648
    %v866 = vsel %vm864, %v865, %v856
    %v867 = vsel %vm860, %v863, %v866
    %v868 = vsel %vm857, nan, %v867
    %869 = vst [vmem:[#allocation5] sm:$0xff] %v140
    %870 = vst [vmem:[#allocation5 + $0x8] sm:$0xff] %v244
    %871 = vst [vmem:[#allocation5 + $0x10] sm:$0xff] %v348
    %872 = vst [vmem:[#allocation5 + $0x18] sm:$0xff] %v452
    %873 = vst [vmem:[#allocation5 + $0x20] sm:$0xff] %v556
    %874 = vst [vmem:[#allocation5 + $0x28] sm:$0xff] %v660
    %875 = vst [vmem:[#allocation5 + $0x30] sm:$0xff] %v764
    %876 = vst [vmem:[#allocation5 + $0x38] sm:$0xff] %v868
    // Predicated region
    $region10: #{tpu_custom_call.1} parent=1 // pred_check
      _
    $region11: #{tpu_custom_call.1} parent=1 // pred_check_branch
      %878 = sbr.rel (0) target = $region13
    $region12: #{tpu_custom_call.1} parent=1 // pred_region
      %s880 = ssub.s32 1024, 1024
      %881 = vsyncadd [#allocation4], %s880
      %s883 = sshll.u32 [#allocation5], 4
      %s884 = int_to_ptr.vmem [resolvable:$true] %s883
      %886 = dma.vmem_to_hbm [thread:$0]  %s884, 1024, %s1, [#allocation4]
    $region13: #{tpu_custom_call.1} parent=1 // pred_fallthru
      _
    // Predicated region
    $region14: #{tpu_custom_call.1} parent=1 // pred_check
      _
    $region15: #{tpu_custom_call.1} parent=1 // pred_check_branch
      %888 = sbr.rel (0) target = $region17
    $region16: #{tpu_custom_call.1} parent=1 // pred_region
      %889 = dma.done [#allocation4], 1024
    $region17: #{tpu_custom_call.1} parent=1 // pred_fallthru
      _
    %890 = vsyncpa [#allocation3], 1
    %891 = vsyncpa [#allocation4], 1

</llo_original>
